<compile_context>
chip_gen: v7x
topology: tpu7x:2x2x1
jax: 0.10.0
libtpu: 0.0.40
codegen_flags: <defaults>
</compile_context>

<pallas_src>
import jax
import jax.numpy as jnp
from jax.experimental import pallas as pl
from jax.experimental.pallas import tpu as pltpu


def attention_kernel(enc_ref, dec_ref, we_ref, be_ref, wd_ref, bd_ref,
                     wf_ref, bf_ref, awe_ref, alpha_ref):
    # Shapes (per grid step):
    #   enc_ref  : (Bt*P, E)   flattened encoder_out block (maybe bf16)
    #   dec_ref  : (Bt, D)     decoder hidden block        (maybe bf16)
    #   we_ref   : (E, A), be_ref: (1, A)
    #   wd_ref   : (D, A), bd_ref: (1, A)
    #   wf_ref   : (1, A)      full_att weight row (f32, used on the VPU)
    #   bf_ref   : (1, 1)      full_att bias, SMEM scalar
    #   awe_ref  : (Bt, E)     output: attention-weighted encoding
    #   alpha_ref: (Bt, P)     output: attention weights (lane-dense)
    Bt, P = alpha_ref.shape
    E = awe_ref.shape[-1]
    A = we_ref.shape[-1]

    enc = enc_ref[...]                                       # (Bt*P, E)

    # att1 = encoder_att(encoder_out): tall MXU matmul, f32 accumulation.
    att1 = jnp.dot(enc, we_ref[...],
                   preferred_element_type=jnp.float32) + be_ref[...]   # (Bt*P, A)

    # att2 = decoder_att(decoder_hidden): one matmul for the whole block.
    att2 = jnp.dot(dec_ref[...], wd_ref[...],
                   preferred_element_type=jnp.float32) + bd_ref[...]   # (Bt, A)

    # relu(att1 + att2.unsqueeze(1)); P on the sublane axis, A on lanes.
    h = jnp.maximum(att1.reshape(Bt, P, A) + att2[:, None, :], 0.0)    # (Bt, P, A)

    # full_att: N=1 matmul done as VPU multiply + lane reduction over A.
    att = jnp.sum(h * wf_ref[...][None, :, :], axis=-1) + bf_ref[0, 0]  # (Bt, P)

    # softmax over num_pixels (lane axis), strictly per batch row.
    m = jnp.max(att, axis=-1, keepdims=True)
    e = jnp.exp(att - m)
    alpha = e / jnp.sum(e, axis=-1, keepdims=True)                      # (Bt, P)

    # attention_weighted_encoding = sum_p encoder_out * alpha (f32 accumulate).
    enc3 = enc.reshape(Bt, P, E).astype(jnp.float32)
    awe = jnp.sum(enc3 * alpha[:, :, None], axis=1)                     # (Bt, E)

    awe_ref[...] = awe
    alpha_ref[...] = alpha


def attention_forward(encoder_out, decoder_hidden, params, *, block_b=8,
                      compute_dtype=jnp.float32):
    """Pallas forward. compute_dtype=bf16 casts only the MXU/stream operands
    (encoder_out, W_enc^T, decoder_hidden, W_dec^T); accumulation stays f32."""
    B, P, E = encoder_out.shape
    D = decoder_hidden.shape[1]
    A = params["w_enc"].shape[0]

    assert block_b % 8 == 0, "block_b must be a multiple of 8 (sublane tiling)"
    Bt = block_b
    n_blocks = pl.cdiv(B, Bt)
    B_pad = n_blocks * Bt
    if B_pad != B:
        # Pad the batch tail with zeros (softmax of a constant row is uniform,
        # never NaN); padded rows are sliced off below.
        pad = B_pad - B
        encoder_out = jnp.pad(encoder_out, ((0, pad), (0, 0), (0, 0)))
        decoder_hidden = jnp.pad(decoder_hidden, ((0, pad), (0, 0)))

    # MXU / streaming operands in compute_dtype; everything else stays f32.
    enc_flat = encoder_out.reshape(B_pad * P, E).astype(compute_dtype)
    dec = decoder_hidden.astype(compute_dtype)
    we_t = params["w_enc"].T.astype(compute_dtype)           # (E, A)
    wd_t = params["w_dec"].T.astype(compute_dtype)           # (D, A)
    wf_row = params["w_full"].astype(jnp.float32)            # (1, A), VPU path
    be = params["b_enc"].reshape(1, A).astype(jnp.float32)
    bd = params["b_dec"].reshape(1, A).astype(jnp.float32)
    bf = params["b_full"].reshape(1, 1).astype(jnp.float32)  # scalar -> SMEM

    # NOTE(v7x): with Bt<=128 the double-buffered encoder blocks stay far under
    # the 64 MiB VMEM; grids with >=2 blocks shard across the 2 TensorCores.
    awe, alpha = pl.pallas_call(
        attention_kernel,
        out_shape=(jax.ShapeDtypeStruct((B_pad, E), jnp.float32),
                   jax.ShapeDtypeStruct((B_pad, P), jnp.float32)),
        grid_spec=pltpu.PrefetchScalarGridSpec(
            num_scalar_prefetch=0,
            grid=(n_blocks,),
            in_specs=[
                pl.BlockSpec((Bt * P, E), lambda b: (b, 0)),   # encoder_out (flat)
                pl.BlockSpec((Bt, D), lambda b: (b, 0)),       # decoder_hidden
                pl.BlockSpec((E, A), lambda b: (0, 0)),        # W_enc^T
                pl.BlockSpec((1, A), lambda b: (0, 0)),        # b_enc
                pl.BlockSpec((D, A), lambda b: (0, 0)),        # W_dec^T
                pl.BlockSpec((1, A), lambda b: (0, 0)),        # b_dec
                pl.BlockSpec((1, A), lambda b: (0, 0)),        # W_full row
                pl.BlockSpec(memory_space=pltpu.MemorySpace.SMEM),  # b_full scalar
            ],
            out_specs=(
                pl.BlockSpec((Bt, E), lambda b: (b, 0)),       # weighted encoding
                pl.BlockSpec((Bt, P), lambda b: (b, 0)),       # alpha (lane-dense)
            ),
        ),
        compiler_params=pltpu.CompilerParams(
            dimension_semantics=("parallel",)),
    )(enc_flat, dec, we_t, be, wd_t, bd, wf_row, bf)

    return awe[:B], alpha[:B]


def reference_forward(encoder_out, decoder_hidden, p):
    """Pure-JAX mirror of the PyTorch forward, for a correctness check."""
    att1 = encoder_out @ p["w_enc"].T + p["b_enc"]
    att2 = decoder_hidden @ p["w_dec"].T + p["b_dec"]
    att = (jnp.maximum(att1 + att2[:, None, :], 0.0) @ p["w_full"].T
           + p["b_full"]).squeeze(2)
    alpha = jax.nn.softmax(att, axis=1)
    awe = (encoder_out * alpha[:, :, None]).sum(axis=1)
    return awe, alpha


if __name__ == "__main__":
    # Small shapes consistent with the module's forward.
    B, P = 2, 16           # batch, num_pixels
    E, D, A = 32, 32, 64   # encoder_dim, decoder_dim, attention_dim

    key = jax.random.PRNGKey(0)
    k = jax.random.split(key, 8)

    params = {
        "w_enc": 0.1 * jax.random.normal(k[0], (A, E), jnp.float32),   # nn.Linear(E, A)
        "b_enc": 0.1 * jax.random.normal(k[1], (A,), jnp.float32),
        "w_dec": 0.1 * jax.random.normal(k[2], (A, D), jnp.float32),   # nn.Linear(D, A)
        "b_dec": 0.1 * jax.random.normal(k[3], (A,), jnp.float32),
        "w_full": 0.1 * jax.random.normal(k[4], (1, A), jnp.float32),  # nn.Linear(A, 1)
        "b_full": 0.1 * jax.random.normal(k[5], (1,), jnp.float32),
    }

    encoder_out = jax.random.normal(k[6], (B, P, E), jnp.float32)
    decoder_hidden = jax.random.normal(k[7], (B, D), jnp.float32)

    awe_ref, alpha_ref = reference_forward(encoder_out, decoder_hidden, params)

    # f32 path (v5e-friendly: all VPU/EUP math and MXU operands in f32).
    awe, alpha = attention_forward(encoder_out, decoder_hidden, params)
    jax.block_until_ready((awe, alpha))
    assert awe.shape == (B, E) and alpha.shape == (B, P)
    assert jnp.allclose(awe, awe_ref, atol=1e-5, rtol=1e-5)
    assert jnp.allclose(alpha, alpha_ref, atol=1e-5, rtol=1e-5)

    # bf16 MXU-operand path (v6e/v7x): halves HBM bytes on the streamed
    # encoder_out, keeps f32 accumulation; compared against the f32 reference
    # with a bf16-appropriate tolerance.
    awe16, alpha16 = attention_forward(encoder_out, decoder_hidden, params,
                                       compute_dtype=jnp.bfloat16)
    jax.block_until_ready((awe16, alpha16))
    assert jnp.allclose(awe16, awe_ref, atol=3e-2, rtol=3e-2)
    assert jnp.allclose(alpha16, alpha_ref, atol=3e-2, rtol=3e-2)

    print("KERNEL_OK")
</pallas_src>

<mosaic_0001>
module attributes {stable_mosaic.version = 11 : i64} {
  func.func @attention_kernel(%arg0: i32, %arg1: memref<128x32xf32, #tpu.memory_space<vmem>>, %arg2: memref<8x32xf32, #tpu.memory_space<vmem>>, %arg3: memref<32x64xf32, #tpu.memory_space<vmem>>, %arg4: memref<1x64xf32, #tpu.memory_space<vmem>>, %arg5: memref<32x64xf32, #tpu.memory_space<vmem>>, %arg6: memref<1x64xf32, #tpu.memory_space<vmem>>, %arg7: memref<1x64xf32, #tpu.memory_space<vmem>>, %arg8: memref<1x1xf32, #tpu.memory_space<smem>>, %arg9: memref<8x32xf32, #tpu.memory_space<vmem>>, %arg10: memref<8x16xf32, #tpu.memory_space<vmem>>) attributes {dimension_semantics = [#tpu.dimension_semantics<parallel>], iteration_bounds = array<i64: 1>, scalar_prefetch = 0 : i64, scratch_operands = 0 : i64, tpu.core_type = #tpu.core_type<tc>, window_params = [{transform_indices = @transform_0, window_bounds = array<i64: 128, 32>}, {transform_indices = @transform_1, window_bounds = array<i64: 8, 32>}, {pipeline_mode = #tpu.pipeline_mode<synchronous>, transform_indices = @transform_2, window_bounds = array<i64: 32, 64>}, {pipeline_mode = #tpu.pipeline_mode<synchronous>, transform_indices = @transform_3, window_bounds = array<i64: 1, 64>}, {pipeline_mode = #tpu.pipeline_mode<synchronous>, transform_indices = @transform_4, window_bounds = array<i64: 32, 64>}, {pipeline_mode = #tpu.pipeline_mode<synchronous>, transform_indices = @transform_5, window_bounds = array<i64: 1, 64>}, {pipeline_mode = #tpu.pipeline_mode<synchronous>, transform_indices = @transform_6, window_bounds = array<i64: 1, 64>}, {transform_indices = @transform_7, window_bounds = array<i64: 1, 1>}, {transform_indices = @transform_8, window_bounds = array<i64: 8, 32>}, {transform_indices = @transform_9, window_bounds = array<i64: 8, 16>}]} {
    %c0 = arith.constant 0 : index
    %c0_0 = arith.constant 0 : index
    %0 = vector.load %arg1[%c0, %c0_0] : memref<128x32xf32, #tpu.memory_space<vmem>>, vector<128x32xf32>
    %c0_1 = arith.constant 0 : index
    %c0_2 = arith.constant 0 : index
    %1 = vector.load %arg3[%c0_1, %c0_2] : memref<32x64xf32, #tpu.memory_space<vmem>>, vector<32x64xf32>
    %cst = arith.constant dense<0.000000e+00> : vector<128x64xf32>
    %2 = tpu.matmul %0, %1, %cst {dimension_numbers = #tpu.dot_dimension_numbers<[1], [0], [0], [1], [0, 0, 1, 1], [], []>} : vector<128x32xf32>, vector<32x64xf32>, vector<128x64xf32> -> vector<128x64xf32>
    %c0_3 = arith.constant 0 : index
    %c0_4 = arith.constant 0 : index
    %3 = vector.load %arg4[%c0_3, %c0_4] : memref<1x64xf32, #tpu.memory_space<vmem>>, vector<1x64xf32>
    %4 = vector.broadcast %3 : vector<1x64xf32> to vector<128x64xf32>
    %5 = arith.addf %2, %4 : vector<128x64xf32>
    %c0_5 = arith.constant 0 : index
    %c0_6 = arith.constant 0 : index
    %6 = vector.load %arg2[%c0_5, %c0_6] : memref<8x32xf32, #tpu.memory_space<vmem>>, vector<8x32xf32>
    %c0_7 = arith.constant 0 : index
    %c0_8 = arith.constant 0 : index
    %7 = vector.load %arg5[%c0_7, %c0_8] : memref<32x64xf32, #tpu.memory_space<vmem>>, vector<32x64xf32>
    %cst_9 = arith.constant dense<0.000000e+00> : vector<8x64xf32>
    %8 = tpu.matmul %6, %7, %cst_9 {dimension_numbers = #tpu.dot_dimension_numbers<[1], [0], [0], [1], [0, 0, 1, 1], [], []>} : vector<8x32xf32>, vector<32x64xf32>, vector<8x64xf32> -> vector<8x64xf32>
    %c0_10 = arith.constant 0 : index
    %c0_11 = arith.constant 0 : index
    %9 = vector.load %arg6[%c0_10, %c0_11] : memref<1x64xf32, #tpu.memory_space<vmem>>, vector<1x64xf32>
    %10 = vector.broadcast %9 : vector<1x64xf32> to vector<8x64xf32>
    %11 = arith.addf %8, %10 : vector<8x64xf32>
    %12 = vector.shape_cast %5 : vector<128x64xf32> to vector<8x16x64xf32>
    %13 = vector.shape_cast %11 : vector<8x64xf32> to vector<8x1x64xf32>
    %14 = vector.broadcast %13 : vector<8x1x64xf32> to vector<8x16x64xf32>
    %15 = arith.addf %12, %14 : vector<8x16x64xf32>
    %cst_12 = arith.constant 0.000000e+00 : f32
    %16 = vector.broadcast %cst_12 : f32 to vector<8x16x64xf32>
    %17 = arith.maximumf %15, %16 : vector<8x16x64xf32>
    %c0_13 = arith.constant 0 : index
    %c0_14 = arith.constant 0 : index
    %18 = vector.load %arg7[%c0_13, %c0_14] : memref<1x64xf32, #tpu.memory_space<vmem>>, vector<1x64xf32>
    %19 = vector.shape_cast %18 : vector<1x64xf32> to vector<1x1x64xf32>
    %20 = vector.broadcast %19 : vector<1x1x64xf32> to vector<8x16x64xf32>
    %21 = arith.mulf %17, %20 : vector<8x16x64xf32>
    %cst_15 = arith.constant dense<0.000000e+00> : vector<8x16xf32>
    %22 = vector.multi_reduction <add>, %21, %cst_15 [2] : vector<8x16x64xf32> to vector<8x16xf32>
    %c0_16 = arith.constant 0 : index
    %c0_17 = arith.constant 0 : index
    %23 = memref.load %arg8[%c0_16, %c0_17] : memref<1x1xf32, #tpu.memory_space<smem>>
    %24 = vector.broadcast %23 : f32 to vector<8x16xf32>
    %25 = arith.addf %22, %24 : vector<8x16xf32>
    %cst_18 = arith.constant dense<0xFF800000> : vector<8xf32>
    %26 = vector.multi_reduction <maximumf>, %25, %cst_18 [1] : vector<8x16xf32> to vector<8xf32>
    %27 = vector.shape_cast %26 : vector<8xf32> to vector<8x1xf32>
    %28 = vector.broadcast %27 : vector<8x1xf32> to vector<8x16xf32>
    %29 = arith.subf %25, %28 : vector<8x16xf32>
    %30 = math.exp %29 : vector<8x16xf32>
    %cst_19 = arith.constant dense<0.000000e+00> : vector<8xf32>
    %31 = vector.multi_reduction <add>, %30, %cst_19 [1] : vector<8x16xf32> to vector<8xf32>
    %32 = vector.shape_cast %31 : vector<8xf32> to vector<8x1xf32>
    %33 = vector.broadcast %32 : vector<8x1xf32> to vector<8x16xf32>
    %34 = arith.divf %30, %33 : vector<8x16xf32>
    %35 = vector.shape_cast %0 : vector<128x32xf32> to vector<8x16x32xf32>
    %36 = vector.shape_cast %34 : vector<8x16xf32> to vector<8x16x1xf32>
    %37 = vector.broadcast %36 : vector<8x16x1xf32> to vector<8x16x32xf32>
    %38 = arith.mulf %35, %37 : vector<8x16x32xf32>
    %cst_20 = arith.constant dense<0.000000e+00> : vector<8x32xf32>
    %39 = vector.multi_reduction <add>, %38, %cst_20 [1] : vector<8x16x32xf32> to vector<8x32xf32>
    %c0_21 = arith.constant 0 : index
    %c0_22 = arith.constant 0 : index
    %40 = vector.load %arg9[%c0_21, %c0_22] : memref<8x32xf32, #tpu.memory_space<vmem>>, vector<8x32xf32>
    tpu.vector_store %arg9[%c0_21, %c0_22], %39 {strides = array<i32>} : memref<8x32xf32, #tpu.memory_space<vmem>>, vector<8x32xf32>,
    %c0_23 = arith.constant 0 : index
    %c0_24 = arith.constant 0 : index
    %41 = vector.load %arg10[%c0_23, %c0_24] : memref<8x16xf32, #tpu.memory_space<vmem>>, vector<8x16xf32>
    tpu.vector_store %arg10[%c0_23, %c0_24], %34 {strides = array<i32>} : memref<8x16xf32, #tpu.memory_space<vmem>>, vector<8x16xf32>,
    return
  }
  func.func @transform_0(%arg0: i32) -> (i32, i32) {
    %c0_i32 = arith.constant 0 : i32
    %c0_i32_0 = arith.constant 0 : i32
    return %arg0, %c0_i32 : i32, i32
  }
  func.func @transform_1(%arg0: i32) -> (i32, i32) {
    %c0_i32 = arith.constant 0 : i32
    %c0_i32_0 = arith.constant 0 : i32
    return %arg0, %c0_i32 : i32, i32
  }
  func.func @transform_2(%arg0: i32) -> (i32, i32) {
    %c0_i32 = arith.constant 0 : i32
    %c0_i32_0 = arith.constant 0 : i32
    %c0_i32_1 = arith.constant 0 : i32
    return %c0_i32, %c0_i32_0 : i32, i32
  }
  func.func @transform_3(%arg0: i32) -> (i32, i32) {
    %c0_i32 = arith.constant 0 : i32
    %c0_i32_0 = arith.constant 0 : i32
    %c0_i32_1 = arith.constant 0 : i32
    return %c0_i32, %c0_i32_0 : i32, i32
  }
  func.func @transform_4(%arg0: i32) -> (i32, i32) {
    %c0_i32 = arith.constant 0 : i32
    %c0_i32_0 = arith.constant 0 : i32
    %c0_i32_1 = arith.constant 0 : i32
    return %c0_i32, %c0_i32_0 : i32, i32
  }
  func.func @transform_5(%arg0: i32) -> (i32, i32) {
    %c0_i32 = arith.constant 0 : i32
    %c0_i32_0 = arith.constant 0 : i32
    %c0_i32_1 = arith.constant 0 : i32
    return %c0_i32, %c0_i32_0 : i32, i32
  }
  func.func @transform_6(%arg0: i32) -> (i32, i32) {
    %c0_i32 = arith.constant 0 : i32
    %c0_i32_0 = arith.constant 0 : i32
    %c0_i32_1 = arith.constant 0 : i32
    return %c0_i32, %c0_i32_0 : i32, i32
  }
  func.func @transform_7(%arg0: i32) -> (i32, i32) {
    %c0_i32 = arith.constant 0 : i32
    %c0_i32_0 = arith.constant 0 : i32
    %c0_i32_1 = arith.constant 0 : i32
    return %c0_i32, %c0_i32_0 : i32, i32
  }
  func.func @transform_8(%arg0: i32) -> (i32, i32) {
    %c0_i32 = arith.constant 0 : i32
    %c0_i32_0 = arith.constant 0 : i32
    return %arg0, %c0_i32 : i32, i32
  }
  func.func @transform_9(%arg0: i32) -> (i32, i32) {
    %c0_i32 = arith.constant 0 : i32
    %c0_i32_0 = arith.constant 0 : i32
    return %arg0, %c0_i32 : i32, i32
  }
}

</mosaic_0001>

<llo_original>
// kernel: tpu_custom_call.1
$region0: #{tpu_custom_call.1}
  #allocation0 [shape = 'u32[]', space=smem, size = 0x4, offset = 0x4, fixed_abs, tag = 'smem constant byte address 0x4 - core index']
  #allocation1 [shape = 'u32[144,128]{1,0:T(1,128)}', space=vmem, size = 0x12000, scoped, tag = 'internal scratch']
  #allocation2 [shape = 'f32[1,1]{1,0:T(1,128)S(6)}', space=smem, size = 0x200, scoped, tag = 'scoped memory for tpu_custom_call.1']
  %s0 = inlined_call_operand.vmem [shape: f32[128,32], index: 0, kind: input, shape index: {}]
  %s1 = inlined_call_operand.vmem [shape: f32[8,32], index: 1, kind: input, shape index: {}]
  %s2 = inlined_call_operand.vmem [shape: f32[32,64], index: 2, kind: input, shape index: {}]
  %s3 = inlined_call_operand.vmem [shape: f32[1,64], index: 3, kind: input, shape index: {}]
  %s4 = inlined_call_operand.vmem [shape: f32[32,64], index: 4, kind: input, shape index: {}]
  %s5 = inlined_call_operand.vmem [shape: f32[1,64], index: 5, kind: input, shape index: {}]
  %s6 = inlined_call_operand.vmem [shape: f32[1,64], index: 6, kind: input, shape index: {}]
  %s7 = inlined_call_operand.<no memory space> [shape: f32[1,1], index: 7, kind: input, shape index: {}]
  %s8 = inlined_call_operand.hbm [shape: f32[8,32], index: 8, kind: output, shape index: {0}]
  %s9 = inlined_call_operand.hbm [shape: f32[8,16], index: 9, kind: output, shape index: {1}]
  %10 = xla_tuple %s8, %s9
  %s11 = sld [smem:[#allocation0]]
  $region50: #{tpu_custom_call.1} parent=0
    _
  %s13 = ssub.s32 1, %s11
  %s14 = scalar_select 0, %s13, %s11
  %15 = sst [smem:[#allocation2]] %s7
  $region1: #{tpu_custom_call.1} parent=0
    #allocation3 [shape = 'u8[4096]{0}', space=vmem, size = 0x1000, scoped, tag = 'output window, operand 0, single buffered']
    #allocation4 [shape = 's32[1]{0}', space=sflag, size = 0x4, scoped, tag = 'scoped memory for tpu_custom_call.1']
    #allocation5 [shape = 'u8[4096]{0}', space=vmem, size = 0x1000, scoped, tag = 'output window, operand 1, single buffered']
    #allocation6 [shape = 's32[1]{0}', space=sflag, size = 0x4, scoped, tag = 'scoped memory for tpu_custom_call.1']
    %16 = vsyncpa [#allocation4], 0
    %17 = vsyncpa [#allocation6], 0
    // Predicated region
    $region2: #{tpu_custom_call.1} parent=1 // pred_check
      _
    $region3: #{tpu_custom_call.1} parent=1 // pred_check_branch
      %19 = sbr.rel (0) target = $region5
    $region4: #{tpu_custom_call.1} parent=1 // pred_region
      _
    $region5: #{tpu_custom_call.1} parent=1 // pred_fallthru
      _
    // Predicated region
    $region6: #{tpu_custom_call.1} parent=1 // pred_check
      _
    $region7: #{tpu_custom_call.1} parent=1 // pred_check_branch
      %21 = sbr.rel (0) target = $region9
    $region8: #{tpu_custom_call.1} parent=1 // pred_region
      _
    $region9: #{tpu_custom_call.1} parent=1 // pred_fallthru
      _
    // Predicated region
    $region10: #{tpu_custom_call.1} parent=1 // pred_check
      _
    $region11: #{tpu_custom_call.1} parent=1 // pred_check_branch
      %23 = sbr.rel (0) target = $region13
    $region12: #{tpu_custom_call.1} parent=1 // pred_region
      _
    $region13: #{tpu_custom_call.1} parent=1 // pred_fallthru
      _
    // Predicated region
    $region14: #{tpu_custom_call.1} parent=1 // pred_check
      _
    $region15: #{tpu_custom_call.1} parent=1 // pred_check_branch
      %25 = sbr.rel (0) target = $region17
    $region16: #{tpu_custom_call.1} parent=1 // pred_region
      _
    $region17: #{tpu_custom_call.1} parent=1 // pred_fallthru
      _
    // Predicated region
    $region18: #{tpu_custom_call.1} parent=1 // pred_check
      _
    $region19: #{tpu_custom_call.1} parent=1 // pred_check_branch
      %27 = sbr.rel (0) target = $region21
    $region20: #{tpu_custom_call.1} parent=1 // pred_region
      _
    $region21: #{tpu_custom_call.1} parent=1 // pred_fallthru
      _
    // Predicated region
    $region22: #{tpu_custom_call.1} parent=1 // pred_check
      _
    $region23: #{tpu_custom_call.1} parent=1 // pred_check_branch
      %29 = sbr.rel (0) target = $region25
    $region24: #{tpu_custom_call.1} parent=1 // pred_region
      _
    $region25: #{tpu_custom_call.1} parent=1 // pred_fallthru
      _
    // Predicated region
    $region26: #{tpu_custom_call.1} parent=1 // pred_check
      _
    $region27: #{tpu_custom_call.1} parent=1 // pred_check_branch
      %31 = sbr.rel (0) target = $region29
    $region28: #{tpu_custom_call.1} parent=1 // pred_region
      _
    $region29: #{tpu_custom_call.1} parent=1 // pred_fallthru
      _
    // Predicated region
    $region30: #{tpu_custom_call.1} parent=1 // pred_check
      _
    $region31: #{tpu_custom_call.1} parent=1 // pred_check_branch
      %33 = sbr.rel (0) target = $region33
    $region32: #{tpu_custom_call.1} parent=1 // pred_region
      _
    $region33: #{tpu_custom_call.1} parent=1 // pred_fallthru
      _
    %v34 = vld [vmem:[%s0] sm:$0xff]
    %v35 = vld [vmem:[%s0 + $0x8] sm:$0xff]
    %v36 = vld [vmem:[%s0 + $0x10] sm:$0xff]
    %v37 = vld [vmem:[%s0 + $0x18] sm:$0xff]
    %v38 = vld [vmem:[%s0 + $0x20] sm:$0xff]
    %v39 = vld [vmem:[%s0 + $0x28] sm:$0xff]
    %v40 = vld [vmem:[%s0 + $0x30] sm:$0xff]
    %v41 = vld [vmem:[%s0 + $0x38] sm:$0xff]
    %v42 = vld [vmem:[%s0 + $0x40] sm:$0xff]
    %v43 = vld [vmem:[%s0 + $0x48] sm:$0xff]
    %v44 = vld [vmem:[%s0 + $0x50] sm:$0xff]
    %v45 = vld [vmem:[%s0 + $0x58] sm:$0xff]
    %v46 = vld [vmem:[%s0 + $0x60] sm:$0xff]
    %v47 = vld [vmem:[%s0 + $0x68] sm:$0xff]
    %v48 = vld [vmem:[%s0 + $0x70] sm:$0xff]
    %v49 = vld [vmem:[%s0 + $0x78] sm:$0xff]
    %v50 = vld [vmem:[%s2] sm:$0xff]
    %v51 = vld [vmem:[%s2 + $0x8] sm:$0xff]
    %v52 = vld [vmem:[%s2 + $0x10] sm:$0xff]
    %v53 = vld [vmem:[%s2 + $0x18] sm:$0xff]
    %v54 = vld [vmem:[%s3] sm:$0x1]
    %v56 = vlaneseq
    %v57 = vshrl.u32 %v56, 7
    %v58 = vsub.s32 0, %v57
    %v59 = vrot.slane %v54, %v58
    %vm61 = vcmask 261120
    %v63 = vsel %vm61, %v34, 0
    %v66 = vsel %vm61, %v35, 0
    %v69 = vsel %vm61, %v36, 0
    %v72 = vsel %vm61, %v37, 0
    %v75 = vsel %vm61, %v38, 0
    %v78 = vsel %vm61, %v39, 0
    %v81 = vsel %vm61, %v40, 0
    %v84 = vsel %vm61, %v41, 0
    %v87 = vsel %vm61, %v42, 0
    %v90 = vsel %vm61, %v43, 0
    %v93 = vsel %vm61, %v44, 0
    %v96 = vsel %vm61, %v45, 0
    %v99 = vsel %vm61, %v46, 0
    %v102 = vsel %vm61, %v47, 0
    %v105 = vsel %vm61, %v48, 0
    %v108 = vsel %vm61, %v49, 0
    %110 = vmatprep.subr.mxu0 0.0
    %111 = vmatpush1.msra.mxu0 %v50
    %112 = vmatprep.subr.mxu0 0.0
    %113 = vmatpush1.msra.mxu0 %v51
    %114 = vmatprep.subr.mxu0 0.0
    %115 = vmatpush1.msra.mxu0 %v52
    %116 = vmatprep.subr.mxu0 0.0
    %117 = vmatpush1.msra.mxu0 %v53
    %118 = vmatprep.subr.mxu0 0.0
    %119 = vmatpush1.msra.mxu0 0.0
    %120 = vmatprep.subr.mxu0 0.0
    %121 = vmatpush1.msra.mxu0 0.0
    %122 = vmatprep.subr.mxu0 0.0
    %123 = vmatpush1.msra.mxu0 0.0
    %124 = vmatprep.subr.mxu0 0.0
    %125 = vmatpush1.msra.mxu0 0.0
    %126 = vmatprep.subr.mxu0 0.0
    %127 = vmatpush1.msra.mxu0 0.0
    %128 = vmatprep.subr.mxu0 0.0
    %129 = vmatpush1.msra.mxu0 0.0
    %130 = vmatprep.subr.mxu0 0.0
    %131 = vmatpush1.msra.mxu0 0.0
    %132 = vmatprep.subr.mxu0 0.0
    %133 = vmatpush1.msra.mxu0 0.0
    %134 = vmatprep.subr.mxu0 0.0
    %135 = vmatpush1.msra.mxu0 0.0
    %136 = vmatprep.subr.mxu0 0.0
    %137 = vmatpush1.msra.mxu0 0.0
    %138 = vmatprep.subr.mxu0 0.0
    %139 = vmatpush1.msra.mxu0 0.0
    %140 = vmatprep.subr.mxu0 0.0
    %141 = vmatpush1.msra.mxu0 0.0
    %142 = vmatprep.subr.mxu0 0.0
    %143 = vmatpush1.msra.mxu0 0.0
    %144 = vmatprep.subr.mxu0 0.0
    %145 = vmatpush1.msra.mxu0 0.0
    %146 = vmatprep.subr.mxu0 0.0
    %147 = vmatpush1.msra.mxu0 0.0
    %148 = vmatprep.subr.mxu0 0.0
    %149 = vmatpush1.msra.mxu0 0.0
    %150 = vmatprep.subr.mxu0 0.0
    %151 = vmatpush1.msra.mxu0 0.0
    %152 = vmatprep.subr.mxu0 0.0
    %153 = vmatpush1.msra.mxu0 0.0
    %154 = vmatprep.subr.mxu0 0.0
    %155 = vmatpush1.msra.mxu0 0.0
    %156 = vmatprep.subr.mxu0 0.0
    %157 = vmatpush1.msra.mxu0 0.0
    %158 = vmatprep.subr.mxu0 0.0
    %159 = vmatpush1.msra.mxu0 0.0
    %160 = vmatprep.subr.mxu0 0.0
    %161 = vmatpush1.msra.mxu0 0.0
    %162 = vmatprep.subr.mxu0 0.0
    %163 = vmatpush1.msra.mxu0 0.0
    %164 = vmatprep.subr.mxu0 0.0
    %165 = vmatpush1.msra.mxu0 0.0
    %166 = vmatprep.subr.mxu0 0.0
    %167 = vmatpush1.msra.mxu0 0.0
    %168 = vmatprep.subr.mxu0 0.0
    %169 = vmatpush1.msra.mxu0 0.0
    %170 = vmatprep.subr.mxu0 0.0
    %171 = vmatpush1.msra.mxu0 0.0
    %172 = vmatprep.subr.mxu0 0.0
    %173 = vmatpush1.msra.mxu0 0.0
    %174 = vmatprep.mubr.f32.mxu0 0.0
    %175 = vmatmul.mubr.f32.gmra.mrb[0].mxu0 %v63
    %v176 = vpop.f32.mrb[0].mxu0
    %v177 = vadd.f32 %v59, %v176
    %v178 = vpop.f32.mrb[0].mxu0
    %179 = vmatprep.mubr.f32.mxu0 0.0
    %180 = vmatmul.mubr.f32.gmra.mrb[0].mxu0 %v66
    %v181 = vpop.f32.mrb[0].mxu0
    %v182 = vadd.f32 %v59, %v181
    %v183 = vpop.f32.mrb[0].mxu0
    %184 = vmatprep.mubr.f32.mxu0 0.0
    %185 = vmatmul.mubr.f32.gmra.mrb[0].mxu0 %v69
    %v186 = vpop.f32.mrb[0].mxu0
    %v187 = vadd.f32 %v59, %v186
    %v188 = vpop.f32.mrb[0].mxu0
    %189 = vmatprep.mubr.f32.mxu0 0.0
    %190 = vmatmul.mubr.f32.gmra.mrb[0].mxu0 %v72
    %v191 = vpop.f32.mrb[0].mxu0
    %v192 = vadd.f32 %v59, %v191
    %v193 = vpop.f32.mrb[0].mxu0
    %194 = vmatprep.mubr.f32.mxu0 0.0
    %195 = vmatmul.mubr.f32.gmra.mrb[0].mxu0 %v75
    %v196 = vpop.f32.mrb[0].mxu0
    %v197 = vadd.f32 %v59, %v196
    %v198 = vpop.f32.mrb[0].mxu0
    %199 = vmatprep.mubr.f32.mxu0 0.0
    %200 = vmatmul.mubr.f32.gmra.mrb[0].mxu0 %v78
    %v201 = vpop.f32.mrb[0].mxu0
    %v202 = vadd.f32 %v59, %v201
    %v203 = vpop.f32.mrb[0].mxu0
    %204 = vmatprep.mubr.f32.mxu0 0.0
    %205 = vmatmul.mubr.f32.gmra.mrb[0].mxu0 %v81
    %v206 = vpop.f32.mrb[0].mxu0
    %v207 = vadd.f32 %v59, %v206
    %v208 = vpop.f32.mrb[0].mxu0
    %209 = vmatprep.mubr.f32.mxu0 0.0
    %210 = vmatmul.mubr.f32.gmra.mrb[0].mxu0 %v84
    %v211 = vpop.f32.mrb[0].mxu0
    %v212 = vadd.f32 %v59, %v211
    %v213 = vpop.f32.mrb[0].mxu0
    %214 = vmatprep.mubr.f32.mxu0 0.0
    %215 = vmatmul.mubr.f32.gmra.mrb[0].mxu0 %v87
    %v216 = vpop.f32.mrb[0].mxu0
    %v217 = vadd.f32 %v59, %v216
    %v218 = vpop.f32.mrb[0].mxu0
    %219 = vmatprep.mubr.f32.mxu0 0.0
    %220 = vmatmul.mubr.f32.gmra.mrb[0].mxu0 %v90
    %v221 = vpop.f32.mrb[0].mxu0
    %v222 = vadd.f32 %v59, %v221
    %v223 = vpop.f32.mrb[0].mxu0
    %224 = vmatprep.mubr.f32.mxu0 0.0
    %225 = vmatmul.mubr.f32.gmra.mrb[0].mxu0 %v93
    %v226 = vpop.f32.mrb[0].mxu0
    %v227 = vadd.f32 %v59, %v226
    %v228 = vpop.f32.mrb[0].mxu0
    %229 = vmatprep.mubr.f32.mxu0 0.0
    %230 = vmatmul.mubr.f32.gmra.mrb[0].mxu0 %v96
    %v231 = vpop.f32.mrb[0].mxu0
    %v232 = vadd.f32 %v59, %v231
    %v233 = vpop.f32.mrb[0].mxu0
    %234 = vmatprep.mubr.f32.mxu0 0.0
    %235 = vmatmul.mubr.f32.gmra.mrb[0].mxu0 %v99
    %v236 = vpop.f32.mrb[0].mxu0
    %v237 = vadd.f32 %v59, %v236
    %v238 = vpop.f32.mrb[0].mxu0
    %239 = vmatprep.mubr.f32.mxu0 0.0
    %240 = vmatmul.mubr.f32.gmra.mrb[0].mxu0 %v102
    %v241 = vpop.f32.mrb[0].mxu0
    %v242 = vadd.f32 %v59, %v241
    %v243 = vpop.f32.mrb[0].mxu0
    %244 = vmatprep.mubr.f32.mxu0 0.0
    %245 = vmatmul.mubr.f32.gmra.mrb[0].mxu0 %v105
    %v246 = vpop.f32.mrb[0].mxu0
    %v247 = vadd.f32 %v59, %v246
    %v248 = vpop.f32.mrb[0].mxu0
    %249 = vmatprep.mubr.f32.mxu0 0.0
    %250 = vmatmul.mubr.f32.gmra.mrb[0].mxu0 %v108
    %v251 = vpop.f32.mrb[0].mxu0
    %v252 = vadd.f32 %v59, %v251
    %v253 = vpop.f32.mrb[0].mxu0
    %254 = vdwg.mxu0
    %v255 = vld [vmem:[%s1] sm:$0xff]
    %v256 = vld [vmem:[%s4] sm:$0xff]
    %v257 = vld [vmem:[%s4 + $0x8] sm:$0xff]
    %v258 = vld [vmem:[%s4 + $0x10] sm:$0xff]
    %v259 = vld [vmem:[%s4 + $0x18] sm:$0xff]
    %v260 = vld [vmem:[%s5] sm:$0x1]
    %v262 = vlaneseq
    %v263 = vshrl.u32 %v262, 7
    %v264 = vsub.s32 0, %v263
    %v265 = vrot.slane %v260, %v264
    %v268 = vsel %vm61, %v255, 0
    %270 = vmatprep.subr.mxu0 0.0
    %271 = vmatpush1.msra.mxu0 %v256
    %272 = vmatprep.subr.mxu0 0.0
    %273 = vmatpush1.msra.mxu0 %v257
    %274 = vmatprep.subr.mxu0 0.0
    %275 = vmatpush1.msra.mxu0 %v258
    %276 = vmatprep.subr.mxu0 0.0
    %277 = vmatpush1.msra.mxu0 %v259
    %278 = vmatprep.subr.mxu0 0.0
    %279 = vmatpush1.msra.mxu0 0.0
    %280 = vmatprep.subr.mxu0 0.0
    %281 = vmatpush1.msra.mxu0 0.0
    %282 = vmatprep.subr.mxu0 0.0
    %283 = vmatpush1.msra.mxu0 0.0
    %284 = vmatprep.subr.mxu0 0.0
    %285 = vmatpush1.msra.mxu0 0.0
    %286 = vmatprep.subr.mxu0 0.0
    %287 = vmatpush1.msra.mxu0 0.0
    %288 = vmatprep.subr.mxu0 0.0
    %289 = vmatpush1.msra.mxu0 0.0
    %290 = vmatprep.subr.mxu0 0.0
    %291 = vmatpush1.msra.mxu0 0.0
    %292 = vmatprep.subr.mxu0 0.0
    %293 = vmatpush1.msra.mxu0 0.0
    %294 = vmatprep.subr.mxu0 0.0
    %295 = vmatpush1.msra.mxu0 0.0
    %296 = vmatprep.subr.mxu0 0.0
    %297 = vmatpush1.msra.mxu0 0.0
    %298 = vmatprep.subr.mxu0 0.0
    %299 = vmatpush1.msra.mxu0 0.0
    %300 = vmatprep.subr.mxu0 0.0
    %301 = vmatpush1.msra.mxu0 0.0
    %302 = vmatprep.subr.mxu0 0.0
    %303 = vmatpush1.msra.mxu0 0.0
    %304 = vmatprep.subr.mxu0 0.0
    %305 = vmatpush1.msra.mxu0 0.0
    %306 = vmatprep.subr.mxu0 0.0
    %307 = vmatpush1.msra.mxu0 0.0
    %308 = vmatprep.subr.mxu0 0.0
    %309 = vmatpush1.msra.mxu0 0.0
    %310 = vmatprep.subr.mxu0 0.0
    %311 = vmatpush1.msra.mxu0 0.0
    %312 = vmatprep.subr.mxu0 0.0
    %313 = vmatpush1.msra.mxu0 0.0
    %314 = vmatprep.subr.mxu0 0.0
    %315 = vmatpush1.msra.mxu0 0.0
    %316 = vmatprep.subr.mxu0 0.0
    %317 = vmatpush1.msra.mxu0 0.0
    %318 = vmatprep.subr.mxu0 0.0
    %319 = vmatpush1.msra.mxu0 0.0
    %320 = vmatprep.subr.mxu0 0.0
    %321 = vmatpush1.msra.mxu0 0.0
    %322 = vmatprep.subr.mxu0 0.0
    %323 = vmatpush1.msra.mxu0 0.0
    %324 = vmatprep.subr.mxu0 0.0
    %325 = vmatpush1.msra.mxu0 0.0
    %326 = vmatprep.subr.mxu0 0.0
    %327 = vmatpush1.msra.mxu0 0.0
    %328 = vmatprep.subr.mxu0 0.0
    %329 = vmatpush1.msra.mxu0 0.0
    %330 = vmatprep.subr.mxu0 0.0
    %331 = vmatpush1.msra.mxu0 0.0
    %332 = vmatprep.subr.mxu0 0.0
    %333 = vmatpush1.msra.mxu0 0.0
    %334 = vmatprep.mubr.f32.mxu0 0.0
    %335 = vmatmul.mubr.f32.gmra.mrb[0].mxu0 %v268
    %v336 = vpop.f32.mrb[0].mxu0
    %v337 = vadd.f32 %v265, %v336
    %v338 = vpop.f32.mrb[0].mxu0
    %339 = vdwg.mxu0
    %v341 = vcombine.high %v337, %v337
    %v343 = vunpack.c.l.s4 1966171168
    %v344 = vunpack.c.0.s8 %v343
    %v345 = vlaneseq
    %v346 = vshrl.u32 %v345, 7
    %v347 = vsub.s32 %v344, %v346
    %v348 = vrot.slane %v337, %v347
    %v350 = vunpack.c.l.s4 1966171168
    %v351 = vunpack.c.0.s8 %v350
    %v352 = vlaneseq
    %v353 = vshrl.u32 %v352, 7
    %v354 = vsub.s32 %v351, %v353
    %v355 = vrot.slane %v341, %v354
    %v356 = vcombine.high %v348, %v348
    %v357 = vcombine.high %v355, %v355
    %v359 = vunpack.c.l.s4 1966171168
    %v360 = vunpack.c.0.s8 %v359
    %v361 = vlaneseq
    %v362 = vshrl.u32 %v361, 7
    %v363 = vsub.s32 %v360, %v362
    %v364 = vrot.slane %v348, %v363
    %v366 = vunpack.c.l.s4 1966171168
    %v367 = vunpack.c.0.s8 %v366
    %v368 = vlaneseq
    %v369 = vshrl.u32 %v368, 7
    %v370 = vsub.s32 %v367, %v369
    %v371 = vrot.slane %v355, %v370
    %v373 = vunpack.c.l.s4 1966171168
    %v374 = vunpack.c.0.s8 %v373
    %v375 = vlaneseq
    %v376 = vshrl.u32 %v375, 7
    %v377 = vsub.s32 %v374, %v376
    %v378 = vrot.slane %v356, %v377
    %v380 = vunpack.c.l.s4 1966171168
    %v381 = vunpack.c.0.s8 %v380
    %v382 = vlaneseq
    %v383 = vshrl.u32 %v382, 7
    %v384 = vsub.s32 %v381, %v383
    %v385 = vrot.slane %v357, %v384
    %v386 = vcombine.high %v364, %v364
    %v387 = vcombine.high %v371, %v371
    %v388 = vcombine.high %v378, %v378
    %v389 = vcombine.high %v385, %v385
    %v390 = vlaneseq
    %v391 = vshrl.u32 %v390, 7
    %v392 = vsub.s32 0, %v391
    %v393 = vrot.slane %v364, %v392
    %v394 = vlaneseq
    %v395 = vshrl.u32 %v394, 7
    %v396 = vsub.s32 0, %v395
    %v397 = vrot.slane %v378, %v396
    %v398 = vlaneseq
    %v399 = vshrl.u32 %v398, 7
    %v400 = vsub.s32 0, %v399
    %v401 = vrot.slane %v386, %v400
    %v402 = vlaneseq
    %v403 = vshrl.u32 %v402, 7
    %v404 = vsub.s32 0, %v403
    %v405 = vrot.slane %v388, %v404
    %v406 = vlaneseq
    %v407 = vshrl.u32 %v406, 7
    %v408 = vsub.s32 0, %v407
    %v409 = vrot.slane %v371, %v408
    %v410 = vlaneseq
    %v411 = vshrl.u32 %v410, 7
    %v412 = vsub.s32 0, %v411
    %v413 = vrot.slane %v385, %v412
    %v414 = vlaneseq
    %v415 = vshrl.u32 %v414, 7
    %v416 = vsub.s32 0, %v415
    %v417 = vrot.slane %v387, %v416
    %v418 = vlaneseq
    %v419 = vshrl.u32 %v418, 7
    %v420 = vsub.s32 0, %v419
    %v421 = vrot.slane %v389, %v420
    %v430 = vadd.f32 %v177, %v393
    %v431 = vadd.f32 %v182, %v393
    %v432 = vadd.f32 %v187, %v397
    %v433 = vadd.f32 %v192, %v397
    %v434 = vadd.f32 %v197, %v401
    %v435 = vadd.f32 %v202, %v401
    %v436 = vadd.f32 %v207, %v405
    %v437 = vadd.f32 %v212, %v405
    %v438 = vadd.f32 %v217, %v409
    %v439 = vadd.f32 %v222, %v409
    %v440 = vadd.f32 %v227, %v413
    %v441 = vadd.f32 %v232, %v413
    %v442 = vadd.f32 %v237, %v417
    %v443 = vadd.f32 %v242, %v417
    %v444 = vadd.f32 %v247, %v421
    %v445 = vadd.f32 %v252, %v421
    %v446 = vmax.f32 %v430, 0.0
    %v447 = vmax.f32 %v431, 0.0
    %v448 = vmax.f32 %v432, 0.0
    %v449 = vmax.f32 %v433, 0.0
    %v450 = vmax.f32 %v434, 0.0
    %v451 = vmax.f32 %v435, 0.0
    %v452 = vmax.f32 %v436, 0.0
    %v453 = vmax.f32 %v437, 0.0
    %v454 = vmax.f32 %v438, 0.0
    %v455 = vmax.f32 %v439, 0.0
    %v456 = vmax.f32 %v440, 0.0
    %v457 = vmax.f32 %v441, 0.0
    %v458 = vmax.f32 %v442, 0.0
    %v459 = vmax.f32 %v443, 0.0
    %v460 = vmax.f32 %v444, 0.0
    %v461 = vmax.f32 %v445, 0.0
    %v462 = vld [vmem:[%s6] sm:$0x1]
    %v464 = vlaneseq
    %v465 = vshrl.u32 %v464, 7
    %v466 = vsub.s32 0, %v465
    %v467 = vrot.slane %v462, %v466
    %v469 = vmul.f32 %v446, %v467
    %v470 = vmul.f32 %v447, %v467
    %v471 = vmul.f32 %v448, %v467
    %v472 = vmul.f32 %v449, %v467
    %v473 = vmul.f32 %v450, %v467
    %v474 = vmul.f32 %v451, %v467
    %v475 = vmul.f32 %v452, %v467
    %v476 = vmul.f32 %v453, %v467
    %v477 = vmul.f32 %v454, %v467
    %v478 = vmul.f32 %v455, %v467
    %v479 = vmul.f32 %v456, %v467
    %v480 = vmul.f32 %v457, %v467
    %v481 = vmul.f32 %v458, %v467
    %v482 = vmul.f32 %v459, %v467
    %v483 = vmul.f32 %v460, %v467
    %v484 = vmul.f32 %v461, %v467
    %vm485 = vcmask 523264
    %v486 = vsel %vm485, %v469, 0.0
    %487 = vadd.xlane.f32.xlu0 %v486
    %v488 = vpop.xlane.xlu0 %487
    %v489 = vsel %vm485, %v470, 0.0
    %490 = vadd.xlane.f32.xlu0 %v489
    %v491 = vpop.xlane.xlu0 %490
    %v492 = vsel %vm485, %v471, 0.0
    %493 = vadd.xlane.f32.xlu0 %v492
    %v494 = vpop.xlane.xlu0 %493
    %v495 = vsel %vm485, %v472, 0.0
    %496 = vadd.xlane.f32.xlu0 %v495
    %v497 = vpop.xlane.xlu0 %496
    %v498 = vsel %vm485, %v473, 0.0
    %499 = vadd.xlane.f32.xlu0 %v498
    %v500 = vpop.xlane.xlu0 %499
    %v501 = vsel %vm485, %v474, 0.0
    %502 = vadd.xlane.f32.xlu0 %v501
    %v503 = vpop.xlane.xlu0 %502
    %v504 = vsel %vm485, %v475, 0.0
    %505 = vadd.xlane.f32.xlu0 %v504
    %v506 = vpop.xlane.xlu0 %505
    %v507 = vsel %vm485, %v476, 0.0
    %508 = vadd.xlane.f32.xlu0 %v507
    %v509 = vpop.xlane.xlu0 %508
    %v510 = vsel %vm485, %v477, 0.0
    %511 = vadd.xlane.f32.xlu0 %v510
    %v512 = vpop.xlane.xlu0 %511
    %v513 = vsel %vm485, %v478, 0.0
    %514 = vadd.xlane.f32.xlu0 %v513
    %v515 = vpop.xlane.xlu0 %514
    %v516 = vsel %vm485, %v479, 0.0
    %517 = vadd.xlane.f32.xlu0 %v516
    %v518 = vpop.xlane.xlu0 %517
    %v519 = vsel %vm485, %v480, 0.0
    %520 = vadd.xlane.f32.xlu0 %v519
    %v521 = vpop.xlane.xlu0 %520
    %v522 = vsel %vm485, %v481, 0.0
    %523 = vadd.xlane.f32.xlu0 %v522
    %v524 = vpop.xlane.xlu0 %523
    %v525 = vsel %vm485, %v482, 0.0
    %526 = vadd.xlane.f32.xlu0 %v525
    %v527 = vpop.xlane.xlu0 %526
    %v528 = vsel %vm485, %v483, 0.0
    %529 = vadd.xlane.f32.xlu0 %v528
    %v530 = vpop.xlane.xlu0 %529
    %v531 = vsel %vm485, %v484, 0.0
    %532 = vadd.xlane.f32.xlu0 %v531
    %v533 = vpop.xlane.xlu0 %532
    %s534 = sld [smem:[#allocation2]]
    %v535 = vstv %s534
    %v536 = vadd.f32 %v488, %v535
    %v537 = vadd.f32 %v491, %v535
    %v538 = vadd.f32 %v494, %v535
    %v539 = vadd.f32 %v497, %v535
    %v540 = vadd.f32 %v500, %v535
    %v541 = vadd.f32 %v503, %v535
    %v542 = vadd.f32 %v506, %v535
    %v543 = vadd.f32 %v509, %v535
    %v544 = vadd.f32 %v512, %v535
    %v545 = vadd.f32 %v515, %v535
    %v546 = vadd.f32 %v518, %v535
    %v547 = vadd.f32 %v521, %v535
    %v548 = vadd.f32 %v524, %v535
    %v549 = vadd.f32 %v527, %v535
    %v550 = vadd.f32 %v530, %v535
    %v551 = vadd.f32 %v533, %v535
    %v568 = vlaneseq
    %v569 = vand.u32 %v568, 127
    %v570 = vlaneseq
    %v571 = vshrl.u32 %v570, 7
    %v572 = vsub.s32 %v569, %v571
    %v573 = vrot.slane %v536, %v572
    %v574 = vadd.s32 %v569, 4294967288
    %v575 = vlaneseq
    %v576 = vshrl.u32 %v575, 7
    %v577 = vsub.s32 %v574, %v576
    %v578 = vrot.slane %v537, %v577
    %vm579 = vcmask 130112
    %v580 = vsel %vm579, %v578, %v573
    %v581 = vlaneseq
    %v582 = vshrl.u32 %v581, 7
    %v583 = vsub.s32 %v569, %v582
    %v584 = vrot.slane %v538, %v583
    %v585 = vlaneseq
    %v586 = vshrl.u32 %v585, 7
    %v587 = vsub.s32 %v574, %v586
    %v588 = vrot.slane %v539, %v587
    %v589 = vsel %vm579, %v588, %v584
    %v590 = vlaneseq
    %v591 = vshrl.u32 %v590, 7
    %v592 = vsub.s32 %v569, %v591
    %v593 = vrot.slane %v540, %v592
    %v594 = vlaneseq
    %v595 = vshrl.u32 %v594, 7
    %v596 = vsub.s32 %v574, %v595
    %v597 = vrot.slane %v541, %v596
    %v598 = vsel %vm579, %v597, %v593
    %v599 = vlaneseq
    %v600 = vshrl.u32 %v599, 7
    %v601 = vsub.s32 %v569, %v600
    %v602 = vrot.slane %v542, %v601
    %v603 = vlaneseq
    %v604 = vshrl.u32 %v603, 7
    %v605 = vsub.s32 %v574, %v604
    %v606 = vrot.slane %v543, %v605
    %v607 = vsel %vm579, %v606, %v602
    %v608 = vlaneseq
    %v609 = vshrl.u32 %v608, 7
    %v610 = vsub.s32 %v569, %v609
    %v611 = vrot.slane %v544, %v610
    %v612 = vlaneseq
    %v613 = vshrl.u32 %v612, 7
    %v614 = vsub.s32 %v574, %v613
    %v615 = vrot.slane %v545, %v614
    %v616 = vsel %vm579, %v615, %v611
    %v617 = vlaneseq
    %v618 = vshrl.u32 %v617, 7
    %v619 = vsub.s32 %v569, %v618
    %v620 = vrot.slane %v546, %v619
    %v621 = vlaneseq
    %v622 = vshrl.u32 %v621, 7
    %v623 = vsub.s32 %v574, %v622
    %v624 = vrot.slane %v547, %v623
    %v625 = vsel %vm579, %v624, %v620
    %v626 = vlaneseq
    %v627 = vshrl.u32 %v626, 7
    %v628 = vsub.s32 %v569, %v627
    %v629 = vrot.slane %v548, %v628
    %v630 = vlaneseq
    %v631 = vshrl.u32 %v630, 7
    %v632 = vsub.s32 %v574, %v631
    %v633 = vrot.slane %v549, %v632
    %v634 = vsel %vm579, %v633, %v629
    %v635 = vlaneseq
    %v636 = vshrl.u32 %v635, 7
    %v637 = vsub.s32 %v569, %v636
    %v638 = vrot.slane %v550, %v637
    %v639 = vlaneseq
    %v640 = vshrl.u32 %v639, 7
    %v641 = vsub.s32 %v574, %v640
    %v642 = vrot.slane %v551, %v641
    %v643 = vsel %vm579, %v642, %v638
    %vm644 = vcmask 1041409
    %v645 = vsel %vm644, %v589, %v580
    %vm646 = vcmask 1042434
    %v647 = vsel %vm646, %v598, %v645
    %vm648 = vcmask 1043459
    %v649 = vsel %vm648, %v607, %v647
    %vm650 = vcmask 1044484
    %v651 = vsel %vm650, %v616, %v649
    %vm652 = vcmask 1045509
    %v653 = vsel %vm652, %v625, %v651
    %vm654 = vcmask 1046534
    %v655 = vsel %vm654, %v634, %v653
    %vm656 = vcmask 1047559
    %v657 = vsel %vm656, %v643, %v655
    %vm659 = vcmask 130048
    %v660 = vsel %vm659, %v657, -inf
    %661 = vmax.xlane.f32.xlu0 %v660
    %v662 = vpop.xlane.xlu0 %661
    %v664 = vlaneseq
    %v665 = vshrl.u32 %v664, 7
    %v666 = vsub.s32 0, %v665
    %v667 = vrot.slane %v662, %v666
    %v668 = vlaneseq
    %v669 = vshrl.u32 %v668, 7
    %v670 = vsub.s32 1, %v669
    %v671 = vrot.slane %v662, %v670
    %v672 = vlaneseq
    %v673 = vshrl.u32 %v672, 7
    %v674 = vsub.s32 2, %v673
    %v675 = vrot.slane %v662, %v674
    %v676 = vlaneseq
    %v677 = vshrl.u32 %v676, 7
    %v678 = vsub.s32 3, %v677
    %v679 = vrot.slane %v662, %v678
    %v680 = vlaneseq
    %v681 = vshrl.u32 %v680, 7
    %v682 = vsub.s32 4, %v681
    %v683 = vrot.slane %v662, %v682
    %v684 = vlaneseq
    %v685 = vshrl.u32 %v684, 7
    %v686 = vsub.s32 5, %v685
    %v687 = vrot.slane %v662, %v686
    %v688 = vlaneseq
    %v689 = vshrl.u32 %v688, 7
    %v690 = vsub.s32 6, %v689
    %v691 = vrot.slane %v662, %v690
    %v692 = vlaneseq
    %v693 = vshrl.u32 %v692, 7
    %v694 = vsub.s32 7, %v693
    %v695 = vrot.slane %v662, %v694
    %v704 = vsub.f32 %v536, %v667
    %v705 = vsub.f32 %v537, %v667
    %v706 = vsub.f32 %v538, %v671
    %v707 = vsub.f32 %v539, %v671
    %v708 = vsub.f32 %v540, %v675
    %v709 = vsub.f32 %v541, %v675
    %v710 = vsub.f32 %v542, %v679
    %v711 = vsub.f32 %v543, %v679
    %v712 = vsub.f32 %v544, %v683
    %v713 = vsub.f32 %v545, %v683
    %v714 = vsub.f32 %v546, %v687
    %v715 = vsub.f32 %v547, %v687
    %v716 = vsub.f32 %v548, %v691
    %v717 = vsub.f32 %v549, %v691
    %v718 = vsub.f32 %v550, %v695
    %v719 = vsub.f32 %v551, %v695
    %v720 = vmul.f32 %v704, 1.442695
    %v721 = vpow.pop %v720
    %v722 = vmul.f32 %v705, 1.442695
    %v723 = vpow.pop %v722
    %v724 = vmul.f32 %v706, 1.442695
    %v725 = vpow.pop %v724
    %v726 = vmul.f32 %v707, 1.442695
    %v727 = vpow.pop %v726
    %v728 = vmul.f32 %v708, 1.442695
    %v729 = vpow.pop %v728
    %v730 = vmul.f32 %v709, 1.442695
    %v731 = vpow.pop %v730
    %v732 = vmul.f32 %v710, 1.442695
    %v733 = vpow.pop %v732
    %v734 = vmul.f32 %v711, 1.442695
    %v735 = vpow.pop %v734
    %v736 = vmul.f32 %v712, 1.442695
    %v737 = vpow.pop %v736
    %v738 = vmul.f32 %v713, 1.442695
    %v739 = vpow.pop %v738
    %v740 = vmul.f32 %v714, 1.442695
    %v741 = vpow.pop %v740
    %v742 = vmul.f32 %v715, 1.442695
    %v743 = vpow.pop %v742
    %v744 = vmul.f32 %v716, 1.442695
    %v745 = vpow.pop %v744
    %v746 = vmul.f32 %v717, 1.442695
    %v747 = vpow.pop %v746
    %v748 = vmul.f32 %v718, 1.442695
    %v749 = vpow.pop %v748
    %v750 = vmul.f32 %v719, 1.442695
    %v751 = vpow.pop %v750
    %768 = vset.pattern.permute.xlu0 0
    %769 = vperm.xlu0 %768, %v721
    %v770 = vpop.permute.xlu0 %769
    %771 = vset.pattern.permute.xlu0 0
    %772 = vperm.xlu0 %771, %v723
    %v773 = vpop.permute.xlu0 %772
    %774 = vset.pattern.permute.xlu0 0
    %775 = vperm.xlu0 %774, %v725
    %v776 = vpop.permute.xlu0 %775
    %777 = vset.pattern.permute.xlu0 0
    %778 = vperm.xlu0 %777, %v727
    %v779 = vpop.permute.xlu0 %778
    %780 = vset.pattern.permute.xlu0 0
    %781 = vperm.xlu0 %780, %v729
    %v782 = vpop.permute.xlu0 %781
    %783 = vset.pattern.permute.xlu0 0
    %784 = vperm.xlu0 %783, %v731
    %v785 = vpop.permute.xlu0 %784
    %786 = vset.pattern.permute.xlu0 0
    %787 = vperm.xlu0 %786, %v733
    %v788 = vpop.permute.xlu0 %787
    %789 = vset.pattern.permute.xlu0 0
    %790 = vperm.xlu0 %789, %v735
    %v791 = vpop.permute.xlu0 %790
    %792 = vset.pattern.permute.xlu0 0
    %793 = vperm.xlu0 %792, %v737
    %v794 = vpop.permute.xlu0 %793
    %795 = vset.pattern.permute.xlu0 0
    %796 = vperm.xlu0 %795, %v739
    %v797 = vpop.permute.xlu0 %796
    %798 = vset.pattern.permute.xlu0 0
    %799 = vperm.xlu0 %798, %v741
    %v800 = vpop.permute.xlu0 %799
    %801 = vset.pattern.permute.xlu0 0
    %802 = vperm.xlu0 %801, %v743
    %v803 = vpop.permute.xlu0 %802
    %804 = vset.pattern.permute.xlu0 0
    %805 = vperm.xlu0 %804, %v745
    %v806 = vpop.permute.xlu0 %805
    %807 = vset.pattern.permute.xlu0 0
    %808 = vperm.xlu0 %807, %v747
    %v809 = vpop.permute.xlu0 %808
    %810 = vset.pattern.permute.xlu0 0
    %811 = vperm.xlu0 %810, %v749
    %v812 = vpop.permute.xlu0 %811
    %813 = vset.pattern.permute.xlu0 0
    %814 = vperm.xlu0 %813, %v751
    %v815 = vpop.permute.xlu0 %814
    %v816 = vlaneseq
    %v817 = vshrl.u32 %v816, 7
    %v818 = vsub.s32 %v569, %v817
    %v819 = vrot.slane %v770, %v818
    %v820 = vlaneseq
    %v821 = vshrl.u32 %v820, 7
    %v822 = vsub.s32 %v574, %v821
    %v823 = vrot.slane %v773, %v822
    %v824 = vsel %vm579, %v823, %v819
    %v825 = vlaneseq
    %v826 = vshrl.u32 %v825, 7
    %v827 = vsub.s32 %v569, %v826
    %v828 = vrot.slane %v776, %v827
    %v829 = vlaneseq
    %v830 = vshrl.u32 %v829, 7
    %v831 = vsub.s32 %v574, %v830
    %v832 = vrot.slane %v779, %v831
    %v833 = vsel %vm579, %v832, %v828
    %v834 = vlaneseq
    %v835 = vshrl.u32 %v834, 7
    %v836 = vsub.s32 %v569, %v835
    %v837 = vrot.slane %v782, %v836
    %v838 = vlaneseq
    %v839 = vshrl.u32 %v838, 7
    %v840 = vsub.s32 %v574, %v839
    %v841 = vrot.slane %v785, %v840
    %v842 = vsel %vm579, %v841, %v837
    %v843 = vlaneseq
    %v844 = vshrl.u32 %v843, 7
    %v845 = vsub.s32 %v569, %v844
    %v846 = vrot.slane %v788, %v845
    %v847 = vlaneseq
    %v848 = vshrl.u32 %v847, 7
    %v849 = vsub.s32 %v574, %v848
    %v850 = vrot.slane %v791, %v849
    %v851 = vsel %vm579, %v850, %v846
    %v852 = vlaneseq
    %v853 = vshrl.u32 %v852, 7
    %v854 = vsub.s32 %v569, %v853
    %v855 = vrot.slane %v794, %v854
    %v856 = vlaneseq
    %v857 = vshrl.u32 %v856, 7
    %v858 = vsub.s32 %v574, %v857
    %v859 = vrot.slane %v797, %v858
    %v860 = vsel %vm579, %v859, %v855
    %v861 = vlaneseq
    %v862 = vshrl.u32 %v861, 7
    %v863 = vsub.s32 %v569, %v862
    %v864 = vrot.slane %v800, %v863
    %v865 = vlaneseq
    %v866 = vshrl.u32 %v865, 7
    %v867 = vsub.s32 %v574, %v866
    %v868 = vrot.slane %v803, %v867
    %v869 = vsel %vm579, %v868, %v864
    %v870 = vlaneseq
    %v871 = vshrl.u32 %v870, 7
    %v872 = vsub.s32 %v569, %v871
    %v873 = vrot.slane %v806, %v872
    %v874 = vlaneseq
    %v875 = vshrl.u32 %v874, 7
    %v876 = vsub.s32 %v574, %v875
    %v877 = vrot.slane %v809, %v876
    %v878 = vsel %vm579, %v877, %v873
    %v879 = vlaneseq
    %v880 = vshrl.u32 %v879, 7
    %v881 = vsub.s32 %v569, %v880
    %v882 = vrot.slane %v812, %v881
    %v883 = vlaneseq
    %v884 = vshrl.u32 %v883, 7
    %v885 = vsub.s32 %v574, %v884
    %v886 = vrot.slane %v815, %v885
    %v887 = vsel %vm579, %v886, %v882
    %v888 = vsel %vm644, %v833, %v824
    %v889 = vsel %vm646, %v842, %v888
    %v890 = vsel %vm648, %v851, %v889
    %v891 = vsel %vm650, %v860, %v890
    %v892 = vsel %vm652, %v869, %v891
    %v893 = vsel %vm654, %v878, %v892
    %v894 = vsel %vm656, %v887, %v893
    %v896 = vsel %vm659, %v894, 0.0
    %897 = vadd.xlane.f32.xlu0 %v896
    %v898 = vpop.xlane.xlu0 %897
    %v900 = vlaneseq
    %v901 = vshrl.u32 %v900, 7
    %v902 = vsub.s32 0, %v901
    %v903 = vrot.slane %v898, %v902
    %v904 = vlaneseq
    %v905 = vshrl.u32 %v904, 7
    %v906 = vsub.s32 1, %v905
    %v907 = vrot.slane %v898, %v906
    %v908 = vlaneseq
    %v909 = vshrl.u32 %v908, 7
    %v910 = vsub.s32 2, %v909
    %v911 = vrot.slane %v898, %v910
    %v912 = vlaneseq
    %v913 = vshrl.u32 %v912, 7
    %v914 = vsub.s32 3, %v913
    %v915 = vrot.slane %v898, %v914
    %v916 = vlaneseq
    %v917 = vshrl.u32 %v916, 7
    %v918 = vsub.s32 4, %v917
    %v919 = vrot.slane %v898, %v918
    %v920 = vlaneseq
    %v921 = vshrl.u32 %v920, 7
    %v922 = vsub.s32 5, %v921
    %v923 = vrot.slane %v898, %v922
    %v924 = vlaneseq
    %v925 = vshrl.u32 %v924, 7
    %v926 = vsub.s32 6, %v925
    %v927 = vrot.slane %v898, %v926
    %v928 = vlaneseq
    %v929 = vshrl.u32 %v928, 7
    %v930 = vsub.s32 7, %v929
    %v931 = vrot.slane %v898, %v930
    %v940 = vrcp.pop %v903
    %v941 = vmul.f32 %v721, %v940
    %v942 = vmul.f32 %v723, %v940
    %v943 = vrcp.pop %v907
    %v944 = vmul.f32 %v725, %v943
    %v945 = vmul.f32 %v727, %v943
    %v946 = vrcp.pop %v911
    %v947 = vmul.f32 %v729, %v946
    %v948 = vmul.f32 %v731, %v946
    %v949 = vrcp.pop %v915
    %v950 = vmul.f32 %v733, %v949
    %v951 = vmul.f32 %v735, %v949
    %v952 = vrcp.pop %v919
    %v953 = vmul.f32 %v737, %v952
    %v954 = vmul.f32 %v739, %v952
    %v955 = vrcp.pop %v923
    %v956 = vmul.f32 %v741, %v955
    %v957 = vmul.f32 %v743, %v955
    %v958 = vrcp.pop %v927
    %v959 = vmul.f32 %v745, %v958
    %v960 = vmul.f32 %v747, %v958
    %v961 = vrcp.pop %v931
    %v962 = vmul.f32 %v749, %v961
    %v963 = vmul.f32 %v751, %v961
    %965 = vset.pattern.permute.xlu0 0
    %966 = vperm.xlu0 %965, %v941
    %v967 = vpop.permute.xlu0 %966
    %970 = vset.pattern.permute.xlu0 0
    %971 = vperm.xlu0 %970, %v942
    %v972 = vpop.permute.xlu0 %971
    %975 = vset.pattern.permute.xlu0 0
    %976 = vperm.xlu0 %975, %v944
    %v977 = vpop.permute.xlu0 %976
    %980 = vset.pattern.permute.xlu0 0
    %981 = vperm.xlu0 %980, %v945
    %v982 = vpop.permute.xlu0 %981
    %985 = vset.pattern.permute.xlu0 0
    %986 = vperm.xlu0 %985, %v947
    %v987 = vpop.permute.xlu0 %986
    %990 = vset.pattern.permute.xlu0 0
    %991 = vperm.xlu0 %990, %v948
    %v992 = vpop.permute.xlu0 %991
    %995 = vset.pattern.permute.xlu0 0
    %996 = vperm.xlu0 %995, %v950
    %v997 = vpop.permute.xlu0 %996
    %1000 = vset.pattern.permute.xlu0 0
    %1001 = vperm.xlu0 %1000, %v951
    %v1002 = vpop.permute.xlu0 %1001
    %1005 = vset.pattern.permute.xlu0 0
    %1006 = vperm.xlu0 %1005, %v953
    %v1007 = vpop.permute.xlu0 %1006
    %1010 = vset.pattern.permute.xlu0 0
    %1011 = vperm.xlu0 %1010, %v954
    %v1012 = vpop.permute.xlu0 %1011
    %1015 = vset.pattern.permute.xlu0 0
    %1016 = vperm.xlu0 %1015, %v956
    %v1017 = vpop.permute.xlu0 %1016
    %1020 = vset.pattern.permute.xlu0 0
    %1021 = vperm.xlu0 %1020, %v957
    %v1022 = vpop.permute.xlu0 %1021
    %1025 = vset.pattern.permute.xlu0 0
    %1026 = vperm.xlu0 %1025, %v959
    %v1027 = vpop.permute.xlu0 %1026
    %1030 = vset.pattern.permute.xlu0 0
    %1031 = vperm.xlu0 %1030, %v960
    %v1032 = vpop.permute.xlu0 %1031
    %1035 = vset.pattern.permute.xlu0 0
    %1036 = vperm.xlu0 %1035, %v962
    %v1037 = vpop.permute.xlu0 %1036
    %1040 = vset.pattern.permute.xlu0 0
    %1041 = vperm.xlu0 %1040, %v963
    %v1042 = vpop.permute.xlu0 %1041
    %v1044 = vmul.f32 %v34, %v967
    %v1045 = vmul.f32 %v35, %v972
    %v1046 = vmul.f32 %v36, %v977
    %v1047 = vmul.f32 %v37, %v982
    %v1048 = vmul.f32 %v38, %v987
    %v1049 = vmul.f32 %v39, %v992
    %v1050 = vmul.f32 %v40, %v997
    %v1051 = vmul.f32 %v41, %v1002
    %v1052 = vmul.f32 %v42, %v1007
    %v1053 = vmul.f32 %v43, %v1012
    %v1054 = vmul.f32 %v44, %v1017
    %v1055 = vmul.f32 %v45, %v1022
    %v1056 = vmul.f32 %v46, %v1027
    %v1057 = vmul.f32 %v47, %v1032
    %v1058 = vmul.f32 %v48, %v1037
    %v1059 = vmul.f32 %v49, %v1042
    %v1060 = vsel %vm61, %v1044, 0.0
    %v1061 = vsel %vm61, %v1045, 0.0
    %v1062 = vadd.f32 %v1060, %v1061
    %v1063 = vrot.slane %v1062, 4
    %v1064 = vadd.f32 %v1062, %v1063
    %v1065 = vrot.slane %v1064, 2
    %v1066 = vadd.f32 %v1064, %v1065
    %v1067 = vrot.slane %v1066, 1
    %v1068 = vadd.f32 %v1066, %v1067
    %v1069 = vsel %vm61, %v1046, 0.0
    %v1070 = vsel %vm61, %v1047, 0.0
    %v1071 = vadd.f32 %v1069, %v1070
    %v1072 = vrot.slane %v1071, 4
    %v1073 = vadd.f32 %v1071, %v1072
    %v1074 = vrot.slane %v1073, 2
    %v1075 = vadd.f32 %v1073, %v1074
    %v1076 = vrot.slane %v1075, 1
    %v1077 = vadd.f32 %v1075, %v1076
    %v1078 = vsel %vm61, %v1048, 0.0
    %v1079 = vsel %vm61, %v1049, 0.0
    %v1080 = vadd.f32 %v1078, %v1079
    %v1081 = vrot.slane %v1080, 4
    %v1082 = vadd.f32 %v1080, %v1081
    %v1083 = vrot.slane %v1082, 2
    %v1084 = vadd.f32 %v1082, %v1083
    %v1085 = vrot.slane %v1084, 1
    %v1086 = vadd.f32 %v1084, %v1085
    %v1087 = vsel %vm61, %v1050, 0.0
    %v1088 = vsel %vm61, %v1051, 0.0
    %v1089 = vadd.f32 %v1087, %v1088
    %v1090 = vrot.slane %v1089, 4
    %v1091 = vadd.f32 %v1089, %v1090
    %v1092 = vrot.slane %v1091, 2
    %v1093 = vadd.f32 %v1091, %v1092
    %v1094 = vrot.slane %v1093, 1
    %v1095 = vadd.f32 %v1093, %v1094
    %v1096 = vsel %vm61, %v1052, 0.0
    %v1097 = vsel %vm61, %v1053, 0.0
    %v1098 = vadd.f32 %v1096, %v1097
    %v1099 = vrot.slane %v1098, 4
    %v1100 = vadd.f32 %v1098, %v1099
    %v1101 = vrot.slane %v1100, 2
    %v1102 = vadd.f32 %v1100, %v1101
    %v1103 = vrot.slane %v1102, 1
    %v1104 = vadd.f32 %v1102, %v1103
    %v1105 = vsel %vm61, %v1054, 0.0
    %v1106 = vsel %vm61, %v1055, 0.0
    %v1107 = vadd.f32 %v1105, %v1106
    %v1108 = vrot.slane %v1107, 4
    %v1109 = vadd.f32 %v1107, %v1108
    %v1110 = vrot.slane %v1109, 2
    %v1111 = vadd.f32 %v1109, %v1110
    %v1112 = vrot.slane %v1111, 1
    %v1113 = vadd.f32 %v1111, %v1112
    %v1114 = vsel %vm61, %v1056, 0.0
    %v1115 = vsel %vm61, %v1057, 0.0
    %v1116 = vadd.f32 %v1114, %v1115
    %v1117 = vrot.slane %v1116, 4
    %v1118 = vadd.f32 %v1116, %v1117
    %v1119 = vrot.slane %v1118, 2
    %v1120 = vadd.f32 %v1118, %v1119
    %v1121 = vrot.slane %v1120, 1
    %v1122 = vadd.f32 %v1120, %v1121
    %v1123 = vsel %vm61, %v1058, 0.0
    %v1124 = vsel %vm61, %v1059, 0.0
    %v1125 = vadd.f32 %v1123, %v1124
    %v1126 = vrot.slane %v1125, 4
    %v1127 = vadd.f32 %v1125, %v1126
    %v1128 = vrot.slane %v1127, 2
    %v1129 = vadd.f32 %v1127, %v1128
    %v1130 = vrot.slane %v1129, 1
    %v1131 = vadd.f32 %v1129, %v1130
    %v1140 = vsel %vm644, %v1077, %v1068
    %v1141 = vsel %vm646, %v1086, %v1140
    %v1142 = vsel %vm648, %v1095, %v1141
    %v1143 = vsel %vm650, %v1104, %v1142
    %v1144 = vsel %vm652, %v1113, %v1143
    %v1145 = vsel %vm654, %v1122, %v1144
    %v1146 = vsel %vm656, %v1131, %v1145
    %1148 = vst.msk [vmem:[#allocation3] sm:$0xff] %vm61, %v1146
    %v1149 = vlaneseq
    %v1150 = vshrl.u32 %v1149, 7
    %v1151 = vsub.s32 %v569, %v1150
    %v1152 = vrot.slane %v967, %v1151
    %v1153 = vlaneseq
    %v1154 = vshrl.u32 %v1153, 7
    %v1155 = vsub.s32 %v574, %v1154
    %v1156 = vrot.slane %v972, %v1155
    %v1157 = vsel %vm579, %v1156, %v1152
    %v1158 = vlaneseq
    %v1159 = vshrl.u32 %v1158, 7
    %v1160 = vsub.s32 %v569, %v1159
    %v1161 = vrot.slane %v977, %v1160
    %v1162 = vlaneseq
    %v1163 = vshrl.u32 %v1162, 7
    %v1164 = vsub.s32 %v574, %v1163
    %v1165 = vrot.slane %v982, %v1164
    %v1166 = vsel %vm579, %v1165, %v1161
    %v1167 = vlaneseq
    %v1168 = vshrl.u32 %v1167, 7
    %v1169 = vsub.s32 %v569, %v1168
    %v1170 = vrot.slane %v987, %v1169
    %v1171 = vlaneseq
    %v1172 = vshrl.u32 %v1171, 7
    %v1173 = vsub.s32 %v574, %v1172
    %v1174 = vrot.slane %v992, %v1173
    %v1175 = vsel %vm579, %v1174, %v1170
    %v1176 = vlaneseq
    %v1177 = vshrl.u32 %v1176, 7
    %v1178 = vsub.s32 %v569, %v1177
    %v1179 = vrot.slane %v997, %v1178
    %v1180 = vlaneseq
    %v1181 = vshrl.u32 %v1180, 7
    %v1182 = vsub.s32 %v574, %v1181
    %v1183 = vrot.slane %v1002, %v1182
    %v1184 = vsel %vm579, %v1183, %v1179
    %v1185 = vlaneseq
    %v1186 = vshrl.u32 %v1185, 7
    %v1187 = vsub.s32 %v569, %v1186
    %v1188 = vrot.slane %v1007, %v1187
    %v1189 = vlaneseq
    %v1190 = vshrl.u32 %v1189, 7
    %v1191 = vsub.s32 %v574, %v1190
    %v1192 = vrot.slane %v1012, %v1191
    %v1193 = vsel %vm579, %v1192, %v1188
    %v1194 = vlaneseq
    %v1195 = vshrl.u32 %v1194, 7
    %v1196 = vsub.s32 %v569, %v1195
    %v1197 = vrot.slane %v1017, %v1196
    %v1198 = vlaneseq
    %v1199 = vshrl.u32 %v1198, 7
    %v1200 = vsub.s32 %v574, %v1199
    %v1201 = vrot.slane %v1022, %v1200
    %v1202 = vsel %vm579, %v1201, %v1197
    %v1203 = vlaneseq
    %v1204 = vshrl.u32 %v1203, 7
    %v1205 = vsub.s32 %v569, %v1204
    %v1206 = vrot.slane %v1027, %v1205
    %v1207 = vlaneseq
    %v1208 = vshrl.u32 %v1207, 7
    %v1209 = vsub.s32 %v574, %v1208
    %v1210 = vrot.slane %v1032, %v1209
    %v1211 = vsel %vm579, %v1210, %v1206
    %v1212 = vlaneseq
    %v1213 = vshrl.u32 %v1212, 7
    %v1214 = vsub.s32 %v569, %v1213
    %v1215 = vrot.slane %v1037, %v1214
    %v1216 = vlaneseq
    %v1217 = vshrl.u32 %v1216, 7
    %v1218 = vsub.s32 %v574, %v1217
    %v1219 = vrot.slane %v1042, %v1218
    %v1220 = vsel %vm579, %v1219, %v1215
    %v1221 = vsel %vm644, %v1166, %v1157
    %v1222 = vsel %vm646, %v1175, %v1221
    %v1223 = vsel %vm648, %v1184, %v1222
    %v1224 = vsel %vm650, %v1193, %v1223
    %v1225 = vsel %vm652, %v1202, %v1224
    %v1226 = vsel %vm654, %v1211, %v1225
    %v1227 = vsel %vm656, %v1220, %v1226
    %1229 = vst.msk [vmem:[#allocation5] sm:$0xff] %vm659, %v1227
    // Predicated region
    $region34: #{tpu_custom_call.1} parent=1 // pred_check
      _
    $region35: #{tpu_custom_call.1} parent=1 // pred_check_branch
      %1231 = sbr.rel (0) target = $region37
    $region36: #{tpu_custom_call.1} parent=1 // pred_region
      %s1233 = ssub.s32 128, 128
      %1234 = vsyncadd [#allocation4], %s1233
      %s1236 = sshll.u32 [#allocation3], 4
      %s1237 = int_to_ptr.vmem [resolvable:$true] %s1236
      %1239 = dma.vmem_to_hbm [thread:$0]  %s1237, 128, %s8, [#allocation4]
    $region37: #{tpu_custom_call.1} parent=1 // pred_fallthru
      _
    // Predicated region
    $region38: #{tpu_custom_call.1} parent=1 // pred_check
      _
    $region39: #{tpu_custom_call.1} parent=1 // pred_check_branch
      %1241 = sbr.rel (0) target = $region41
    $region40: #{tpu_custom_call.1} parent=1 // pred_region
      %s1243 = ssub.s32 128, 128
      %1244 = vsyncadd [#allocation6], %s1243
      %s1246 = sshll.u32 [#allocation5], 4
      %s1247 = int_to_ptr.vmem [resolvable:$true] %s1246
      %1249 = dma.vmem_to_hbm [thread:$0]  %s1247, 128, %s9, [#allocation6]
    $region41: #{tpu_custom_call.1} parent=1 // pred_fallthru
      _
    // Predicated region
    $region42: #{tpu_custom_call.1} parent=1 // pred_check
      _
    $region43: #{tpu_custom_call.1} parent=1 // pred_check_branch
      %1251 = sbr.rel (0) target = $region45
    $region44: #{tpu_custom_call.1} parent=1 // pred_region
      %1252 = dma.done [#allocation4], 128
    $region45: #{tpu_custom_call.1} parent=1 // pred_fallthru
      _
    // Predicated region
    $region46: #{tpu_custom_call.1} parent=1 // pred_check
      _
    $region47: #{tpu_custom_call.1} parent=1 // pred_check_branch
      %1254 = sbr.rel (0) target = $region49
    $region48: #{tpu_custom_call.1} parent=1 // pred_region
      %1255 = dma.done [#allocation6], 128
    $region49: #{tpu_custom_call.1} parent=1 // pred_fallthru
      _
    %1256 = vsyncpa [#allocation4], 1
    %1257 = vsyncpa [#allocation6], 1

</llo_original>
